<compile_context>
chip_gen: v7x
topology: tpu7x:2x2x1
jax: 0.10.0
libtpu: 0.0.40
codegen_flags: <defaults>
</compile_context>

<pallas_src>
import jax
import jax.numpy as jnp
from jax.experimental import pallas as pl
from jax.experimental.pallas import tpu as pltpu


# Row offsets of each weight inside the packed bf16 slab (aligned to 16 rows so
# bf16 sublane packing never straddles a slice start).
_W1_ROWS = (0, 12)    # [12, 8]
_W2_ROWS = (16, 24)   # [8, 5]
_W3_ROWS = (32, 37)   # [5, 2]
_W_SLAB_ROWS = 48
_W_SLAB_COLS = 8      # max out-features among the three layers


def ffn_kernel(x_ref, w_ref, b_ref, o_ref):
    """One batch tile through all three layers. Weights/biases are VMEM-resident."""
    x = x_ref[...]                              # [TB, 12] bf16

    w1 = w_ref[_W1_ROWS[0]:_W1_ROWS[1], 0:8]    # [12, 8] bf16
    w2 = w_ref[_W2_ROWS[0]:_W2_ROWS[1], 0:5]    # [8, 5]  bf16
    w3 = w_ref[_W3_ROWS[0]:_W3_ROWS[1], 0:2]    # [5, 2]  bf16

    b1 = b_ref[0:1, 0:8]                        # [1, 8] f32
    b2 = b_ref[1:2, 0:5]                        # [1, 5] f32
    b3 = b_ref[2:3, 0:2]                        # [1, 2] f32

    # bf16 MXU passes, f32 accumulate; bias-add / ReLU stay in f32.
    h1 = jnp.dot(x, w1, preferred_element_type=jnp.float32) + b1
    h1 = jnp.maximum(h1, 0.0)

    h2 = jnp.dot(h1.astype(jnp.bfloat16), w2, preferred_element_type=jnp.float32) + b2
    h2 = jnp.maximum(h2, 0.0)

    h3 = jnp.dot(h2.astype(jnp.bfloat16), w3, preferred_element_type=jnp.float32) + b3
    o_ref[...] = h3.astype(o_ref.dtype)


def _round_up(n, m):
    return ((n + m - 1) // m) * m


def pack_params(params):
    """Pack W1/W2/W3 into one bf16 slab and b1/b2/b3 into one f32 slab."""
    w = jnp.zeros((_W_SLAB_ROWS, _W_SLAB_COLS), jnp.float32)
    w = w.at[_W1_ROWS[0]:_W1_ROWS[1], 0:8].set(params["W1"])
    w = w.at[_W2_ROWS[0]:_W2_ROWS[1], 0:5].set(params["W2"])
    w = w.at[_W3_ROWS[0]:_W3_ROWS[1], 0:2].set(params["W3"])
    w = w.astype(jnp.bfloat16)

    b = jnp.zeros((8, _W_SLAB_COLS), jnp.float32)
    b = b.at[0, 0:8].set(params["b1"].reshape(8))
    b = b.at[1, 0:5].set(params["b2"].reshape(5))
    b = b.at[2, 0:2].set(params["b3"].reshape(2))
    return w, b


def feed_forward_nn(x, params, *, block_b=1024):
    """x: [B, 12] float32. params: W1,b1,W2,b2,W3,b3 (W as [in,out], b as [1,out])."""
    B, K = x.shape
    assert K == 12
    n_out = params["W3"].shape[1]

    w_slab, b_slab = pack_params(params)

    # Stream x as bf16 (halves HBM read bytes; dots accumulate in f32).
    xb = x.astype(jnp.bfloat16)

    # Batch tile: multiple of 8, at most block_b; pad B so the grid is exact.
    tb = min(block_b, _round_up(B, 8))
    b_pad = _round_up(B, tb)
    if b_pad != B:
        xb = jnp.pad(xb, ((0, b_pad - B), (0, 0)))

    grid = (b_pad // tb,)

    out = pl.pallas_call(
        ffn_kernel,
        out_shape=jax.ShapeDtypeStruct((b_pad, n_out), jnp.float32),
        grid_spec=pltpu.PrefetchScalarGridSpec(
            num_scalar_prefetch=0,
            grid=grid,
            in_specs=[
                # x: tiled over batch, double-buffered by the pipeline.
                pl.BlockSpec((tb, K), lambda i: (i, 0)),
                # packed weights / biases: constant index_map -> VMEM-resident.
                pl.BlockSpec((_W_SLAB_ROWS, _W_SLAB_COLS), lambda i: (0, 0)),
                pl.BlockSpec((8, _W_SLAB_COLS), lambda i: (0, 0)),
            ],
            out_specs=pl.BlockSpec((tb, n_out), lambda i: (i, 0)),
        ),
        compiler_params=pltpu.CompilerParams(
            dimension_semantics=("parallel",),  # shard batch steps across TCs (v7x)
        ),
    )(xb, w_slab, b_slab)

    return out[:B]


def init_params():
    """Deterministic init mirroring PyTorch Linear(12,8)/(8,5)/(5,2) shapes.

    Weights stored as [in, out] so the kernel computes y = x @ W + b.
    """
    key = jax.random.PRNGKey(42)
    ks = jax.random.split(key, 6)

    def uniform_init(k, shape, fan_in):
        bound = 1.0 / jnp.sqrt(fan_in)
        return jax.random.uniform(k, shape, jnp.float32, -bound, bound)

    return {
        "W1": uniform_init(ks[0], (12, 8), 12.0),
        "b1": uniform_init(ks[1], (1, 8), 12.0),
        "W2": uniform_init(ks[2], (8, 5), 8.0),
        "b2": uniform_init(ks[3], (1, 5), 8.0),
        "W3": uniform_init(ks[4], (5, 2), 5.0),
        "b3": uniform_init(ks[5], (1, 2), 5.0),
    }


def reference_forward(x, params):
    """Plain-JAX reference mirroring the kernel's dtype flow (bf16 dots, f32 accum)."""
    bf = lambda a: a.astype(jnp.bfloat16)
    h1 = jnp.dot(bf(x), bf(params["W1"]), preferred_element_type=jnp.float32) + params["b1"]
    h1 = jnp.maximum(h1, 0.0)
    h2 = jnp.dot(bf(h1), bf(params["W2"]), preferred_element_type=jnp.float32) + params["b2"]
    h2 = jnp.maximum(h2, 0.0)
    return jnp.dot(bf(h2), bf(params["W3"]), preferred_element_type=jnp.float32) + params["b3"]


if __name__ == "__main__":
    params = init_params()

    # Spec shape: x = torch.randn(2, 12)
    key = jax.random.PRNGKey(0)
    x_small = jax.random.normal(key, (2, 12), dtype=jnp.float32)

    out_small = feed_forward_nn(x_small, params)
    jax.block_until_ready(out_small)
    ref_small = reference_forward(x_small, params)
    assert out_small.shape == (2, 2)
    assert jnp.allclose(out_small, ref_small, atol=5e-3, rtol=5e-3)

    # Larger batch to exercise the multi-step batch grid / resident-weight path.
    x_big = jax.random.normal(jax.random.PRNGKey(1), (2048, 12), dtype=jnp.float32)
    out_big = feed_forward_nn(x_big, params)
    jax.block_until_ready(out_big)
    ref_big = reference_forward(x_big, params)
    assert out_big.shape == (2048, 2)
    assert jnp.allclose(out_big, ref_big, atol=5e-3, rtol=5e-3)

    print("KERNEL_OK")
</pallas_src>

<mosaic_0001>
module attributes {stable_mosaic.version = 11 : i64} {
  func.func @ffn_kernel(%arg0: i32, %arg1: memref<8x12xbf16, #tpu.memory_space<vmem>>, %arg2: memref<48x8xbf16, #tpu.memory_space<vmem>>, %arg3: memref<8x8xf32, #tpu.memory_space<vmem>>, %arg4: memref<8x2xf32, #tpu.memory_space<vmem>>) attributes {dimension_semantics = [#tpu.dimension_semantics<parallel>], iteration_bounds = array<i64: 1>, scalar_prefetch = 0 : i64, scratch_operands = 0 : i64, tpu.core_type = #tpu.core_type<tc>, window_params = [{transform_indices = @transform_0, window_bounds = array<i64: 8, 12>}, {pipeline_mode = #tpu.pipeline_mode<synchronous>, transform_indices = @transform_1, window_bounds = array<i64: 48, 8>}, {pipeline_mode = #tpu.pipeline_mode<synchronous>, transform_indices = @transform_2, window_bounds = array<i64: 8, 8>}, {transform_indices = @transform_3, window_bounds = array<i64: 8, 2>}]} {
    %c0 = arith.constant 0 : index
    %c0_0 = arith.constant 0 : index
    %0 = vector.load %arg1[%c0, %c0_0] : memref<8x12xbf16, #tpu.memory_space<vmem>>, vector<8x12xbf16>
    %c0_1 = arith.constant 0 : index
    %c0_2 = arith.constant 0 : index
    %1 = vector.load %arg2[%c0_1, %c0_2] : memref<48x8xbf16, #tpu.memory_space<vmem>>, vector<12x8xbf16>
    %c16 = arith.constant 16 : index
    %c0_3 = arith.constant 0 : index
    %2 = vector.load %arg2[%c16, %c0_3] : memref<48x8xbf16, #tpu.memory_space<vmem>>, vector<8x5xbf16>
    %c32 = arith.constant 32 : index
    %c0_4 = arith.constant 0 : index
    %3 = vector.load %arg2[%c32, %c0_4] : memref<48x8xbf16, #tpu.memory_space<vmem>>, vector<5x2xbf16>
    %c0_5 = arith.constant 0 : index
    %c0_6 = arith.constant 0 : index
    %4 = vector.load %arg3[%c0_5, %c0_6] : memref<8x8xf32, #tpu.memory_space<vmem>>, vector<1x8xf32>
    %c1 = arith.constant 1 : index
    %c0_7 = arith.constant 0 : index
    %5 = vector.load %arg3[%c1, %c0_7] : memref<8x8xf32, #tpu.memory_space<vmem>>, vector<1x5xf32>
    %c2 = arith.constant 2 : index
    %c0_8 = arith.constant 0 : index
    %6 = vector.load %arg3[%c2, %c0_8] : memref<8x8xf32, #tpu.memory_space<vmem>>, vector<1x2xf32>
    %cst = arith.constant dense<0.000000e+00> : vector<8x8xf32>
    %7 = tpu.matmul %0, %1, %cst {dimension_numbers = #tpu.dot_dimension_numbers<[1], [0], [0], [1], [0, 0, 1, 1], [], []>} : vector<8x12xbf16>, vector<12x8xbf16>, vector<8x8xf32> -> vector<8x8xf32>
    %8 = vector.broadcast %4 : vector<1x8xf32> to vector<8x8xf32>
    %9 = arith.addf %7, %8 : vector<8x8xf32>
    %cst_9 = arith.constant 0.000000e+00 : f32
    %10 = vector.broadcast %cst_9 : f32 to vector<8x8xf32>
    %11 = arith.maximumf %9, %10 : vector<8x8xf32>
    %12 = arith.truncf %11 : vector<8x8xf32> to vector<8x8xbf16>
    %cst_10 = arith.constant dense<0.000000e+00> : vector<8x5xf32>
    %13 = tpu.matmul %12, %2, %cst_10 {dimension_numbers = #tpu.dot_dimension_numbers<[1], [0], [0], [1], [0, 0, 1, 1], [], []>} : vector<8x8xbf16>, vector<8x5xbf16>, vector<8x5xf32> -> vector<8x5xf32>
    %14 = vector.broadcast %5 : vector<1x5xf32> to vector<8x5xf32>
    %15 = arith.addf %13, %14 : vector<8x5xf32>
    %cst_11 = arith.constant 0.000000e+00 : f32
    %16 = vector.broadcast %cst_11 : f32 to vector<8x5xf32>
    %17 = arith.maximumf %15, %16 : vector<8x5xf32>
    %18 = arith.truncf %17 : vector<8x5xf32> to vector<8x5xbf16>
    %cst_12 = arith.constant dense<0.000000e+00> : vector<8x2xf32>
    %19 = tpu.matmul %18, %3, %cst_12 {dimension_numbers = #tpu.dot_dimension_numbers<[1], [0], [0], [1], [0, 0, 1, 1], [], []>} : vector<8x5xbf16>, vector<5x2xbf16>, vector<8x2xf32> -> vector<8x2xf32>
    %20 = vector.broadcast %6 : vector<1x2xf32> to vector<8x2xf32>
    %21 = arith.addf %19, %20 : vector<8x2xf32>
    %c0_13 = arith.constant 0 : index
    %c0_14 = arith.constant 0 : index
    %22 = vector.load %arg4[%c0_13, %c0_14] : memref<8x2xf32, #tpu.memory_space<vmem>>, vector<8x2xf32>
    tpu.vector_store %arg4[%c0_13, %c0_14], %21 {strides = array<i32>} : memref<8x2xf32, #tpu.memory_space<vmem>>, vector<8x2xf32>,
    return
  }
  func.func @transform_0(%arg0: i32) -> (i32, i32) {
    %c0_i32 = arith.constant 0 : i32
    %c0_i32_0 = arith.constant 0 : i32
    return %arg0, %c0_i32 : i32, i32
  }
  func.func @transform_1(%arg0: i32) -> (i32, i32) {
    %c0_i32 = arith.constant 0 : i32
    %c0_i32_0 = arith.constant 0 : i32
    %c0_i32_1 = arith.constant 0 : i32
    return %c0_i32, %c0_i32_0 : i32, i32
  }
  func.func @transform_2(%arg0: i32) -> (i32, i32) {
    %c0_i32 = arith.constant 0 : i32
    %c0_i32_0 = arith.constant 0 : i32
    %c0_i32_1 = arith.constant 0 : i32
    return %c0_i32, %c0_i32_0 : i32, i32
  }
  func.func @transform_3(%arg0: i32) -> (i32, i32) {
    %c0_i32 = arith.constant 0 : i32
    %c0_i32_0 = arith.constant 0 : i32
    return %arg0, %c0_i32 : i32, i32
  }
}

</mosaic_0001>

<llo_original>
// kernel: tpu_custom_call.1
$region0: #{tpu_custom_call.1}
  #allocation0 [shape = 'u32[]', space=smem, size = 0x4, offset = 0x4, fixed_abs, tag = 'smem constant byte address 0x4 - core index']
  #allocation1 [shape = 'u32[144,128]{1,0:T(1,128)}', space=vmem, size = 0x12000, scoped, tag = 'internal scratch']
  %s0 = inlined_call_operand.vmem [shape: bf16[8,12], index: 0, kind: input, shape index: {}]
  %s1 = inlined_call_operand.vmem [shape: bf16[48,8], index: 1, kind: input, shape index: {}]
  %s2 = inlined_call_operand.vmem [shape: f32[8,8], index: 2, kind: input, shape index: {}]
  %s3 = inlined_call_operand.vmem [shape: f32[8,2], index: 3, kind: output, shape index: {}]
  %s4 = sld [smem:[#allocation0]]
  $region22: #{tpu_custom_call.1} parent=0
    _
  %s6 = ssub.s32 1, %s4
  %s7 = scalar_select 0, %s6, %s4
  // Predicated region
  $region2: #{tpu_custom_call.1} parent=0 // pred_check
    _
  $region3: #{tpu_custom_call.1} parent=0 // pred_check_branch
    %9 = sbr.rel (0) target = $region5
  $region4: #{tpu_custom_call.1} parent=0 // pred_region
    _
  $region5: #{tpu_custom_call.1} parent=0 // pred_fallthru
    _
  // Predicated region
  $region6: #{tpu_custom_call.1} parent=0 // pred_check
    _
  $region7: #{tpu_custom_call.1} parent=0 // pred_check_branch
    %11 = sbr.rel (0) target = $region9
  $region8: #{tpu_custom_call.1} parent=0 // pred_region
    _
  $region9: #{tpu_custom_call.1} parent=0 // pred_fallthru
    _
  // Predicated region
  $region10: #{tpu_custom_call.1} parent=0 // pred_check
    _
  $region11: #{tpu_custom_call.1} parent=0 // pred_check_branch
    %13 = sbr.rel (0) target = $region13
  $region12: #{tpu_custom_call.1} parent=0 // pred_region
    _
  $region13: #{tpu_custom_call.1} parent=0 // pred_fallthru
    _
  %v15 = vld [vmem:[%s0] sm:$0xf]
  %v16 = vld [vmem:[%s1] sm:$0xf]
  %v17 = vld [vmem:[%s1 + $0x4] sm:$0x3]
  %v18 = vld [vmem:[%s1 + $0x8] sm:$0xf]
  %v19 = vld [vmem:[%s1 + $0x10] sm:$0x7]
  %v20 = vld [vmem:[%s2] sm:$0x1]
  %v21 = vld [vmem:[%s2 + $0x1] sm:$0x1]
  %v22 = vld [vmem:[%s2 + $0x2] sm:$0x1]
  %v23 = vlaneseq
  %v24 = vshrl.u32 %v23, 7
  %v25 = vsub.s32 0, %v24
  %v26 = vrot.slane %v20, %v25
  %v29 = vunpack.c.l.b16 %v16
  %v30 = vunpack.c.l.b16 %v17
  %v31 = vpack.c.b16 %v30, %v29
  %vm32 = vcmask 97280
  %v34 = vsel %vm32, %v15, 0
  %vm36 = vcmask 1045504
  %v38 = vsel %vm36, %v31, 0
  %40 = vmatprep.subr.bf16.mxu0 0
  %41 = vmatpush1.bf16.msra.mxu0 %v38
  %42 = vmatprep.subr.bf16.mxu0 0
  %43 = vmatpush1.bf16.msra.mxu0 0
  %44 = vmatprep.subr.bf16.mxu0 0
  %45 = vmatpush1.bf16.msra.mxu0 0
  %46 = vmatprep.subr.bf16.mxu0 0
  %47 = vmatpush1.bf16.msra.mxu0 0
  %48 = vmatprep.subr.bf16.mxu0 0
  %49 = vmatpush1.bf16.msra.mxu0 0
  %50 = vmatprep.subr.bf16.mxu0 0
  %51 = vmatpush1.bf16.msra.mxu0 0
  %52 = vmatprep.subr.bf16.mxu0 0
  %53 = vmatpush1.bf16.msra.mxu0 0
  %54 = vmatprep.subr.bf16.mxu0 0
  %55 = vmatpush1.bf16.msra.mxu0 0
  %56 = vmatprep.subr.bf16.mxu0 0
  %57 = vmatpush1.bf16.msra.mxu0 0
  %58 = vmatprep.subr.bf16.mxu0 0
  %59 = vmatpush1.bf16.msra.mxu0 0
  %60 = vmatprep.subr.bf16.mxu0 0
  %61 = vmatpush1.bf16.msra.mxu0 0
  %62 = vmatprep.subr.bf16.mxu0 0
  %63 = vmatpush1.bf16.msra.mxu0 0
  %64 = vmatprep.subr.bf16.mxu0 0
  %65 = vmatpush1.bf16.msra.mxu0 0
  %66 = vmatprep.subr.bf16.mxu0 0
  %67 = vmatpush1.bf16.msra.mxu0 0
  %68 = vmatprep.subr.bf16.mxu0 0
  %69 = vmatpush1.bf16.msra.mxu0 0
  %70 = vmatprep.subr.bf16.mxu0 0
  %71 = vmatpush1.bf16.msra.mxu0 0
  %72 = vmatprep.mubr.bf16.mxu0 0
  %73 = vmatmul.mubr.bf16.gmra.mrb[0].mxu0 %v34
  %v74 = vpop.f32.mrb[0].mxu0
  %v75 = vadd.f32 %v26, %v74
  %v76 = vpop.f32.mrb[0].mxu0
  %v77 = vpop.f32.mrb[0].mxu0
  %v78 = vpop.f32.mrb[0].mxu0
  %79 = vdwg.mxu0
  %v80 = vmax.f32 %v75, 0.0
  %v81 = vpack.c.bf16 %v80, %v80
  %v82 = vlaneseq
  %v83 = vshrl.u32 %v82, 7
  %v84 = vsub.s32 0, %v83
  %v85 = vrot.slane %v21, %v84
  %vm86 = vcmask 64512
  %v88 = vsel %vm86, %v81, 0
  %vm90 = vcmask 1043456
  %v92 = vsel %vm90, %v18, 0
  %94 = vmatprep.subr.bf16.mxu0 0
  %95 = vmatpush1.bf16.msra.mxu0 %v92
  %96 = vmatprep.subr.bf16.mxu0 0
  %97 = vmatpush1.bf16.msra.mxu0 0
  %98 = vmatprep.subr.bf16.mxu0 0
  %99 = vmatpush1.bf16.msra.mxu0 0
  %100 = vmatprep.subr.bf16.mxu0 0
  %101 = vmatpush1.bf16.msra.mxu0 0
  %102 = vmatprep.subr.bf16.mxu0 0
  %103 = vmatpush1.bf16.msra.mxu0 0
  %104 = vmatprep.subr.bf16.mxu0 0
  %105 = vmatpush1.bf16.msra.mxu0 0
  %106 = vmatprep.subr.bf16.mxu0 0
  %107 = vmatpush1.bf16.msra.mxu0 0
  %108 = vmatprep.subr.bf16.mxu0 0
  %109 = vmatpush1.bf16.msra.mxu0 0
  %110 = vmatprep.subr.bf16.mxu0 0
  %111 = vmatpush1.bf16.msra.mxu0 0
  %112 = vmatprep.subr.bf16.mxu0 0
  %113 = vmatpush1.bf16.msra.mxu0 0
  %114 = vmatprep.subr.bf16.mxu0 0
  %115 = vmatpush1.bf16.msra.mxu0 0
  %116 = vmatprep.subr.bf16.mxu0 0
  %117 = vmatpush1.bf16.msra.mxu0 0
  %118 = vmatprep.subr.bf16.mxu0 0
  %119 = vmatpush1.bf16.msra.mxu0 0
  %120 = vmatprep.subr.bf16.mxu0 0
  %121 = vmatpush1.bf16.msra.mxu0 0
  %122 = vmatprep.subr.bf16.mxu0 0
  %123 = vmatpush1.bf16.msra.mxu0 0
  %124 = vmatprep.subr.bf16.mxu0 0
  %125 = vmatpush1.bf16.msra.mxu0 0
  %126 = vmatprep.mubr.bf16.mxu0 0
  %127 = vmatmul.mubr.bf16.gmra.mrb[0].mxu0 %v88
  %v128 = vpop.f32.mrb[0].mxu0
  %v129 = vadd.f32 %v85, %v128
  %v130 = vpop.f32.mrb[0].mxu0
  %v131 = vpop.f32.mrb[0].mxu0
  %v132 = vpop.f32.mrb[0].mxu0
  %133 = vdwg.mxu0
  %v134 = vmax.f32 %v129, 0.0
  %v135 = vpack.c.bf16 %v134, %v134
  %v136 = vlaneseq
  %v137 = vshrl.u32 %v136, 7
  %v138 = vsub.s32 0, %v137
  %v139 = vrot.slane %v22, %v138
  %vm140 = vcmask 39936
  %v142 = vsel %vm140, %v135, 0
  %vm144 = vcmask 1041408
  %vm145 = vcmask 1042432
  %v146 = vsel %vm144, 4294967295, 65535
  %v147 = vsel %vm145, %v146, 0
  %v149 = vand.u32 %v19, %v147
  %151 = vmatprep.subr.bf16.mxu0 0
  %152 = vmatpush1.bf16.msra.mxu0 %v149
  %153 = vmatprep.subr.bf16.mxu0 0
  %154 = vmatpush1.bf16.msra.mxu0 0
  %155 = vmatprep.subr.bf16.mxu0 0
  %156 = vmatpush1.bf16.msra.mxu0 0
  %157 = vmatprep.subr.bf16.mxu0 0
  %158 = vmatpush1.bf16.msra.mxu0 0
  %159 = vmatprep.subr.bf16.mxu0 0
  %160 = vmatpush1.bf16.msra.mxu0 0
  %161 = vmatprep.subr.bf16.mxu0 0
  %162 = vmatpush1.bf16.msra.mxu0 0
  %163 = vmatprep.subr.bf16.mxu0 0
  %164 = vmatpush1.bf16.msra.mxu0 0
  %165 = vmatprep.subr.bf16.mxu0 0
  %166 = vmatpush1.bf16.msra.mxu0 0
  %167 = vmatprep.subr.bf16.mxu0 0
  %168 = vmatpush1.bf16.msra.mxu0 0
  %169 = vmatprep.subr.bf16.mxu0 0
  %170 = vmatpush1.bf16.msra.mxu0 0
  %171 = vmatprep.subr.bf16.mxu0 0
  %172 = vmatpush1.bf16.msra.mxu0 0
  %173 = vmatprep.subr.bf16.mxu0 0
  %174 = vmatpush1.bf16.msra.mxu0 0
  %175 = vmatprep.subr.bf16.mxu0 0
  %176 = vmatpush1.bf16.msra.mxu0 0
  %177 = vmatprep.subr.bf16.mxu0 0
  %178 = vmatpush1.bf16.msra.mxu0 0
  %179 = vmatprep.subr.bf16.mxu0 0
  %180 = vmatpush1.bf16.msra.mxu0 0
  %181 = vmatprep.subr.bf16.mxu0 0
  %182 = vmatpush1.bf16.msra.mxu0 0
  %183 = vmatprep.mubr.bf16.mxu0 0
  %184 = vmatmul.mubr.bf16.gmra.mrb[0].mxu0 %v142
  %v185 = vpop.f32.mrb[0].mxu0
  %v186 = vadd.f32 %v139, %v185
  %v187 = vpop.f32.mrb[0].mxu0
  %v188 = vpop.f32.mrb[0].mxu0
  %v189 = vpop.f32.mrb[0].mxu0
  %190 = vdwg.mxu0
  %vm191 = vcmask 15360
  %192 = vst.msk [vmem:[%s3] sm:$0xff] %vm191, %v186
  // Predicated region
  $region14: #{tpu_custom_call.1} parent=0 // pred_check
    _
  $region15: #{tpu_custom_call.1} parent=0 // pred_check_branch
    %194 = sbr.rel (0) target = $region17
  $region16: #{tpu_custom_call.1} parent=0 // pred_region
    _
  $region17: #{tpu_custom_call.1} parent=0 // pred_fallthru
    _
  // Predicated region
  $region18: #{tpu_custom_call.1} parent=0 // pred_check
    _
  $region19: #{tpu_custom_call.1} parent=0 // pred_check_branch
    %196 = sbr.rel (0) target = $region21
  $region20: #{tpu_custom_call.1} parent=0 // pred_region
    _
  $region21: #{tpu_custom_call.1} parent=0 // pred_fallthru
    _

</llo_original>
